<compile_context>
chip_gen: v7x
topology: tpu7x:2x2x1
jax: 0.10.0
libtpu: 0.0.40
codegen_flags: <defaults>
</compile_context>

<pallas_src>
import jax
import jax.numpy as jnp
from jax import lax
from jax.experimental import pallas as pl
from jax.experimental.pallas import tpu as pltpu

# ---------------- constants matching the PyTorch module ----------------
OBJ_SCALE = 1.6
HALF_SCALE = OBJ_SCALE / 2.0
INV_HALF_SCALE = 1.0 / HALF_SCALE
SDF_RADIUS = 0.5  # analytic stand-in SDF model (unit-sphere-ish object)
W_REG = (100.0, 100.0, 100.0, 100.0)
W_ALL = {"l_anti": 100.0, "l_touch": 20.0, "l_collision": 10.0, "l_reg": 2.0}
W_CHOOSE = {"l_anti": 100.0, "l_touch": 20.0, "l_reg": 0.0}

EPS = 1e-12            # normalize() guard (matches F.normalize clamp scale)
BIG = 1e30             # "+inf" stand-in for masked min/argmin
N_PAD = 256            # gripper points padded 150 -> 256 (2 full lanes of vregs)
SENTINEL = 1.0e3       # padded points land far outside the object (pen == 0)
OUT_LANES = 128        # lane-dense output
OUT_ROWS = 8           # G-independent (8, 128) output slab; only row 0 consumed

# The analytic sphere SDF already returns unit normals; flip on when plugging in
# a real DeepSDF model whose gradients are not normalized.
RENORMALIZE_SDF_NORMALS = False


def _refine_kernel(params_ref, gpts_ref, out_ref):
    params = params_ref[...]                      # (G, 20) packed per-grasp inputs
    G = params.shape[0]
    inv_g = 1.0 / float(G)

    # layout: [dp1(3) | dp2(3) | dv(3) | dd(1) | lp0(3) | rp0(3) | vec0(3) | depth0(1)]
    d = params[:, 0:10]                           # reordered deltas (for l_reg)
    upd = params[:, 10:20] + d                    # single 10-lane add: updated params

    lx, ly, lz = upd[:, 0:1], upd[:, 1:2], upd[:, 2:3]      # obj_left_points
    rx, ry, rz = upd[:, 3:4], upd[:, 4:5], upd[:, 5:6]      # obj_right_points
    vx, vy, vz = upd[:, 6:7], upd[:, 7:8], upd[:, 8:9]      # approach vectors
    depth = upd[:, 9:10]                                    # depths

    # hori = normalize(rp - lp); keep |rp - lp| for the gripper width
    hx, hy, hz = rx - lx, ry - ly, rz - lz
    h_sq = hx * hx + hy * hy + hz * hz            # (G, 1)
    inv_hn = lax.rsqrt(h_sq + EPS)
    hn = h_sq * inv_hn                            # == sqrt(h_sq)
    hx, hy, hz = hx * inv_hn, hy * inv_hn, hz * inv_hn

    # normal = normalize(cross(hori, vec))
    nx = hy * vz - hz * vy
    ny = hz * vx - hx * vz
    nz = hx * vy - hy * vx
    inv_nn = lax.rsqrt(nx * nx + ny * ny + nz * nz + EPS)
    nx, ny, nz = nx * inv_nn, ny * inv_nn, nz * inv_nn

    # appro_correct = cross(normal, hori)
    ax = ny * hz - nz * hy
    ay = nz * hx - nx * hz
    az = nx * hy - ny * hx

    # RT translation: (lp + rp) * (scale/2) / 2 - appro * depth
    tx = (lx + rx) * (HALF_SCALE * 0.5) - ax * depth
    ty = (ly + ry) * (HALF_SCALE * 0.5) - ay * depth
    tz = (lz + rz) * (HALF_SCALE * 0.5) - az * depth

    # TODO(synk): the external DeepSDF `model` (get_template_points_sdf_normal /
    # get_points_sdf_normal) is not provided; an analytic sphere SDF stands in.
    def sphere_sdf_normal(px_, py_, pz_):
        d2 = px_ * px_ + py_ * py_ + pz_ * pz_
        inv_r = lax.rsqrt(d2 + EPS)
        r = d2 * inv_r
        return r - SDF_RADIUS, (px_ * inv_r, py_ * inv_r, pz_ * inv_r)

    lp_sdf, (lnx, lny, lnz) = sphere_sdf_normal(lx, ly, lz)
    rp_sdf, (rnx, rny, rnz) = sphere_sdf_normal(rx, ry, rz)

    if RENORMALIZE_SDF_NORMALS:
        # torch re-normalizes the model's normals; redundant for the sphere stand-in
        inv_ln = lax.rsqrt(lnx * lnx + lny * lny + lnz * lnz + EPS)
        lnx, lny, lnz = lnx * inv_ln, lny * inv_ln, lnz * inv_ln
        inv_rn = lax.rsqrt(rnx * rnx + rny * rny + rnz * rnz + EPS)
        rnx, rny, rnz = rnx * inv_rn, rny * inv_rn, rnz * inv_rn

    # vec_r2l = -hori, vec_l2r = hori
    l_anti = (lnx * hx + lny * hy + lnz * hz) - (rnx * hx + rny * hy + rnz * hz) + 2.0
    l_touch = jnp.abs(lp_sdf) + jnp.abs(rp_sdf)                  # (G, 1)

    # width from detached updated points (forward-only, detach is a no-op here)
    width = HALF_SCALE * hn                                      # (G, 1)

    gpts = gpts_ref[...]                                         # (8, N_PAD)
    gX = gpts[0:1, :]                                            # (1, N)
    gYb = gpts[1:2, :]
    gZ = gpts[2:3, :]
    sgn = gpts[3:4, :]                                           # 0 / -1 / +1 (0 on pad)
    gY = gYb + sgn * width                                       # (G, N)

    # gripper_points_in_objcoords = (R p + T) / (scale/2); divide hoisted out of the
    # (G, N) hot path: compare |R p + T| against SDF_RADIUS * (scale/2) and rescale
    # the per-grasp penetration sum once. Kept on the VPU (far below MXU tile size).
    px = nx * gX + hx * gY + ax * gZ + tx                        # (G, N)
    py = ny * gX + hy * gY + ay * gZ + ty
    pz = nz * gX + hz * gY + az * gZ + tz
    d2 = px * px + py * py + pz * pz
    r = d2 * lax.rsqrt(d2 + EPS)
    pen = jnp.maximum(SDF_RADIUS * HALF_SCALE - r, 0.0)          # == -where(sdf>0,0,sdf)*H
    l_coll = jnp.sum(pen, axis=1, keepdims=True) * INV_HALF_SCALE  # (G, 1)

    # regularization on the embedding deltas
    def vnorm(a):
        s = jnp.sum(a * a, axis=1, keepdims=True)
        return s * lax.rsqrt(s + EPS)

    l_reg = (W_REG[0] * vnorm(d[:, 0:3]) + W_REG[1] * vnorm(d[:, 3:6])
             + W_REG[2] * jnp.abs(d[:, 9:10]) + W_REG[3] * vnorm(d[:, 6:9]))  # (G, 1)

    loss_total = (W_ALL["l_anti"] * l_anti + W_ALL["l_touch"] * l_touch
                  + W_ALL["l_collision"] * l_coll + W_ALL["l_reg"] * l_reg)
    loss_choose_all = (W_CHOOSE["l_anti"] * l_anti + W_CHOOSE["l_touch"] * l_touch
                       + W_CHOOSE["l_reg"] * l_reg)
    masked_choose = jnp.where(l_coll == 0.0, loss_choose_all, BIG)   # (G, 1)

    # ---- fused epilogue: 1 sum-reduce for all means, 2 min-reduces for selection ----
    lane = lax.broadcasted_iota(jnp.int32, (G, OUT_LANES), 1)

    # means: lanes 0..4 of a single (G, 128) buffer -> one axis-0 reduction
    mbuf = jnp.where(lane == 0, loss_total, jnp.zeros((G, OUT_LANES), jnp.float32))
    mbuf = jnp.where(lane == 1, l_touch, mbuf)
    mbuf = jnp.where(lane == 2, l_anti, mbuf)
    mbuf = jnp.where(lane == 3, l_coll, mbuf)
    mbuf = jnp.where(lane == 4, l_reg, mbuf)
    mean_row = jnp.sum(mbuf, axis=0, keepdims=True) * inv_g      # (1, 128), lanes 0..4

    # best-grasp selection: packed min of {masked_choose, loss_total}, then packed argmin
    vbuf = jnp.where(lane == 0, masked_choose,
                     jnp.full((G, OUT_LANES), BIG, jnp.float32))
    vbuf = jnp.where(lane == 1, loss_total, vbuf)
    vmin = jnp.min(vbuf, axis=0, keepdims=True)                  # (1, 128)
    iota_gf = lax.broadcasted_iota(jnp.int32, (G, OUT_LANES), 0).astype(jnp.float32)
    ibuf = jnp.where(vbuf == vmin, iota_gf, BIG)
    imin = jnp.min(ibuf, axis=0, keepdims=True)                  # (1, 128)

    min_masked, min_total = vmin[:, 0:1], vmin[:, 1:2]           # (1, 1) each
    idx_nc, idx_tot = imin[:, 0:1], imin[:, 1:2]
    use_nc = min_masked < (0.5 * BIG)                            # any non-colliding grasp?
    loss_choose = jnp.where(use_nc, min_masked, min_total)       # (1, 1)
    best_idx_f = jnp.where(use_nc, idx_nc, idx_tot)              # (1, 1)

    # G-independent lane-dense output: lanes 0..6 of row 0 hold the scalars
    out_lane = lax.broadcasted_iota(jnp.int32, (OUT_ROWS, OUT_LANES), 1)
    out = jnp.where(out_lane == 5, loss_choose, mean_row)        # -> (8, 128)
    out = jnp.where(out_lane == 6, best_idx_f, out)
    out_ref[...] = out


@jax.jit
def panda_refine_forward(params, gpts):
    """params: (G, 20) packed [dp1|dp2|dv|dd|lp0|rp0|vec0|depth0]; gpts: (8, N_PAD)."""
    packed = pl.pallas_call(
        _refine_kernel,
        out_shape=jax.ShapeDtypeStruct((OUT_ROWS, OUT_LANES), jnp.float32),
        grid=(1,),
        in_specs=[pl.BlockSpec(params.shape, lambda i: (0, 0)),
                  pl.BlockSpec(gpts.shape, lambda i: (0, 0))],
        out_specs=pl.BlockSpec((OUT_ROWS, OUT_LANES), lambda i: (0, 0)),
        compiler_params=pltpu.CompilerParams(dimension_semantics=("arbitrary",)),
    )(params, gpts)

    row = packed[0, :7]                                          # single small slice
    return {
        "loss": row[0],
        "l_touch": row[1],
        "l_anti": row[2],
        "l_collision": row[3],
        "l_reg": row[4],
        "loss_choose": row[5],
        "best_idx": row[6].astype(jnp.int32),   # exact for G < 2^24
    }


# ---------------- host-side (one-time) packing helpers ----------------
def pack_params(deltas, lp0, rp0, vec0, depth0):
    """`deltas` follows the PyTorch layout [dp1(3)|dp2(3)|dd(1)|dv(3)]; it is
    reordered to [dp1|dp2|dv|dd] so the kernel can add it to the base block
    [lp0|rp0|vec0|depth0] with one 10-lane add."""
    d = jnp.concatenate([deltas[:, 0:6], deltas[:, 7:10], deltas[:, 6:7]], axis=1)
    base = jnp.concatenate([lp0, rp0, vec0, depth0], axis=1)
    return jnp.concatenate([d, base], axis=1).astype(jnp.float32)


def pack_gripper(hand, lf, rf, n_pad=N_PAD, sentinel=SENTINEL):
    pts = jnp.concatenate([hand, lf, rf], axis=0)                 # (N, 3)
    sign = jnp.concatenate([jnp.zeros((hand.shape[0],), jnp.float32),
                            -jnp.ones((lf.shape[0],), jnp.float32),
                            jnp.ones((rf.shape[0],), jnp.float32)])
    n = pts.shape[0]
    pad = n_pad - n
    pts = jnp.concatenate([pts, jnp.full((pad, 3), sentinel, jnp.float32)], axis=0)
    sign = jnp.concatenate([sign, jnp.zeros((pad,), jnp.float32)])
    g = jnp.concatenate([pts.T, sign[None, :]], axis=0)           # (4, n_pad)
    g = jnp.concatenate([g, jnp.zeros((4, n_pad), jnp.float32)], axis=0)  # (8, n_pad)
    return g.astype(jnp.float32)


if __name__ == "__main__":
    key = jax.random.PRNGKey(0)
    ks = jax.random.split(key, 8)

    G = 8                      # num_grasps
    NH, NL, NR = 30, 60, 60    # 150 gripper sample points (150//5, 2*150//5, 2*150//5)

    # nn.Embedding(num_grasps, 10) weight (zeros at init; small deterministic
    # perturbation used here so the delta path is exercised).
    deltas = 0.01 * jax.random.normal(ks[0], (G, 10), jnp.float32)

    # synthetic grasp_params (normalized object coordinates)
    lp0 = (0.3 * jax.random.normal(ks[1], (G, 3), jnp.float32)
           - jnp.array([0.5, 0.0, 0.0], jnp.float32))
    rp0 = (0.3 * jax.random.normal(ks[2], (G, 3), jnp.float32)
           + jnp.array([0.5, 0.0, 0.0], jnp.float32))
    vec0 = jax.random.normal(ks[3], (G, 3), jnp.float32)
    depth0 = 0.05 * jax.random.uniform(ks[4], (G, 1), dtype=jnp.float32)

    # TODO(synk): gripper mesh is normally loaded from fat_hand_part.npz and
    # randomly subsampled; replaced with deterministic synthetic point clouds.
    hand = 0.05 * jax.random.normal(ks[5], (NH, 3), jnp.float32)
    lf = 0.05 * jax.random.normal(ks[6], (NL, 3), jnp.float32)
    rf = 0.05 * jax.random.normal(ks[7], (NR, 3), jnp.float32)

    params = pack_params(deltas, lp0, rp0, vec0, depth0)          # (8, 20)
    gpts = pack_gripper(hand, lf, rf)                             # (8, 256)

    out = panda_refine_forward(params, gpts)
    out = jax.block_until_ready(out)
    print("KERNEL_OK")
</pallas_src>

<mosaic_0001>
module attributes {stable_mosaic.version = 11 : i64} {
  func.func @_refine_kernel(%arg0: i32, %arg1: memref<8x20xf32, #tpu.memory_space<vmem>>, %arg2: memref<8x256xf32, #tpu.memory_space<vmem>>, %arg3: memref<8x128xf32, #tpu.memory_space<vmem>>) attributes {dimension_semantics = [#tpu.dimension_semantics<arbitrary>], iteration_bounds = array<i64: 1>, scalar_prefetch = 0 : i64, scratch_operands = 0 : i64, tpu.core_type = #tpu.core_type<tc>, window_params = [{pipeline_mode = #tpu.pipeline_mode<synchronous>, transform_indices = @transform_0, window_bounds = array<i64: 8, 20>}, {pipeline_mode = #tpu.pipeline_mode<synchronous>, transform_indices = @transform_1, window_bounds = array<i64: 8, 256>}, {pipeline_mode = #tpu.pipeline_mode<synchronous>, transform_indices = @transform_2, window_bounds = array<i64: 8, 128>}]} {
    %c0 = arith.constant 0 : index
    %c0_0 = arith.constant 0 : index
    %0 = vector.load %arg1[%c0, %c0_0] : memref<8x20xf32, #tpu.memory_space<vmem>>, vector<8x20xf32>
    %1 = vector.extract_strided_slice %0 {offsets = [0, 0], sizes = [8, 10], strides = [1, 1]} : vector<8x20xf32> to vector<8x10xf32>
    %2 = vector.extract_strided_slice %0 {offsets = [0, 10], sizes = [8, 10], strides = [1, 1]} : vector<8x20xf32> to vector<8x10xf32>
    %3 = arith.addf %2, %1 : vector<8x10xf32>
    %4 = vector.extract_strided_slice %3 {offsets = [0, 0], sizes = [8, 1], strides = [1, 1]} : vector<8x10xf32> to vector<8x1xf32>
    %5 = vector.extract_strided_slice %3 {offsets = [0, 1], sizes = [8, 1], strides = [1, 1]} : vector<8x10xf32> to vector<8x1xf32>
    %6 = vector.extract_strided_slice %3 {offsets = [0, 2], sizes = [8, 1], strides = [1, 1]} : vector<8x10xf32> to vector<8x1xf32>
    %7 = vector.extract_strided_slice %3 {offsets = [0, 3], sizes = [8, 1], strides = [1, 1]} : vector<8x10xf32> to vector<8x1xf32>
    %8 = vector.extract_strided_slice %3 {offsets = [0, 4], sizes = [8, 1], strides = [1, 1]} : vector<8x10xf32> to vector<8x1xf32>
    %9 = vector.extract_strided_slice %3 {offsets = [0, 5], sizes = [8, 1], strides = [1, 1]} : vector<8x10xf32> to vector<8x1xf32>
    %10 = vector.extract_strided_slice %3 {offsets = [0, 6], sizes = [8, 1], strides = [1, 1]} : vector<8x10xf32> to vector<8x1xf32>
    %11 = vector.extract_strided_slice %3 {offsets = [0, 7], sizes = [8, 1], strides = [1, 1]} : vector<8x10xf32> to vector<8x1xf32>
    %12 = vector.extract_strided_slice %3 {offsets = [0, 8], sizes = [8, 1], strides = [1, 1]} : vector<8x10xf32> to vector<8x1xf32>
    %13 = vector.extract_strided_slice %3 {offsets = [0, 9], sizes = [8, 1], strides = [1, 1]} : vector<8x10xf32> to vector<8x1xf32>
    %14 = arith.subf %7, %4 : vector<8x1xf32>
    %15 = arith.subf %8, %5 : vector<8x1xf32>
    %16 = arith.subf %9, %6 : vector<8x1xf32>
    %17 = arith.mulf %14, %14 : vector<8x1xf32>
    %18 = arith.mulf %15, %15 : vector<8x1xf32>
    %19 = arith.addf %17, %18 : vector<8x1xf32>
    %20 = arith.mulf %16, %16 : vector<8x1xf32>
    %21 = arith.addf %19, %20 : vector<8x1xf32>
    %cst = arith.constant 9.99999996E-13 : f32
    %22 = vector.broadcast %cst : f32 to vector<8x1xf32>
    %23 = arith.addf %21, %22 : vector<8x1xf32>
    %24 = math.rsqrt %23 : vector<8x1xf32>
    %25 = arith.mulf %21, %24 : vector<8x1xf32>
    %26 = arith.mulf %14, %24 : vector<8x1xf32>
    %27 = arith.mulf %15, %24 : vector<8x1xf32>
    %28 = arith.mulf %16, %24 : vector<8x1xf32>
    %29 = arith.mulf %27, %12 : vector<8x1xf32>
    %30 = arith.mulf %28, %11 : vector<8x1xf32>
    %31 = arith.subf %29, %30 : vector<8x1xf32>
    %32 = arith.mulf %28, %10 : vector<8x1xf32>
    %33 = arith.mulf %26, %12 : vector<8x1xf32>
    %34 = arith.subf %32, %33 : vector<8x1xf32>
    %35 = arith.mulf %26, %11 : vector<8x1xf32>
    %36 = arith.mulf %27, %10 : vector<8x1xf32>
    %37 = arith.subf %35, %36 : vector<8x1xf32>
    %38 = arith.mulf %31, %31 : vector<8x1xf32>
    %39 = arith.mulf %34, %34 : vector<8x1xf32>
    %40 = arith.addf %38, %39 : vector<8x1xf32>
    %41 = arith.mulf %37, %37 : vector<8x1xf32>
    %42 = arith.addf %40, %41 : vector<8x1xf32>
    %cst_1 = arith.constant 9.99999996E-13 : f32
    %43 = vector.broadcast %cst_1 : f32 to vector<8x1xf32>
    %44 = arith.addf %42, %43 : vector<8x1xf32>
    %45 = math.rsqrt %44 : vector<8x1xf32>
    %46 = arith.mulf %31, %45 : vector<8x1xf32>
    %47 = arith.mulf %34, %45 : vector<8x1xf32>
    %48 = arith.mulf %37, %45 : vector<8x1xf32>
    %49 = arith.mulf %47, %28 : vector<8x1xf32>
    %50 = arith.mulf %48, %27 : vector<8x1xf32>
    %51 = arith.subf %49, %50 : vector<8x1xf32>
    %52 = arith.mulf %48, %26 : vector<8x1xf32>
    %53 = arith.mulf %46, %28 : vector<8x1xf32>
    %54 = arith.subf %52, %53 : vector<8x1xf32>
    %55 = arith.mulf %46, %27 : vector<8x1xf32>
    %56 = arith.mulf %47, %26 : vector<8x1xf32>
    %57 = arith.subf %55, %56 : vector<8x1xf32>
    %58 = arith.addf %4, %7 : vector<8x1xf32>
    %cst_2 = arith.constant 4.000000e-01 : f32
    %59 = vector.broadcast %cst_2 : f32 to vector<8x1xf32>
    %60 = arith.mulf %58, %59 : vector<8x1xf32>
    %61 = arith.mulf %51, %13 : vector<8x1xf32>
    %62 = arith.subf %60, %61 : vector<8x1xf32>
    %63 = arith.addf %5, %8 : vector<8x1xf32>
    %cst_3 = arith.constant 4.000000e-01 : f32
    %64 = vector.broadcast %cst_3 : f32 to vector<8x1xf32>
    %65 = arith.mulf %63, %64 : vector<8x1xf32>
    %66 = arith.mulf %54, %13 : vector<8x1xf32>
    %67 = arith.subf %65, %66 : vector<8x1xf32>
    %68 = arith.addf %6, %9 : vector<8x1xf32>
    %cst_4 = arith.constant 4.000000e-01 : f32
    %69 = vector.broadcast %cst_4 : f32 to vector<8x1xf32>
    %70 = arith.mulf %68, %69 : vector<8x1xf32>
    %71 = arith.mulf %57, %13 : vector<8x1xf32>
    %72 = arith.subf %70, %71 : vector<8x1xf32>
    %73 = arith.mulf %4, %4 : vector<8x1xf32>
    %74 = arith.mulf %5, %5 : vector<8x1xf32>
    %75 = arith.addf %73, %74 : vector<8x1xf32>
    %76 = arith.mulf %6, %6 : vector<8x1xf32>
    %77 = arith.addf %75, %76 : vector<8x1xf32>
    %cst_5 = arith.constant 9.99999996E-13 : f32
    %78 = vector.broadcast %cst_5 : f32 to vector<8x1xf32>
    %79 = arith.addf %77, %78 : vector<8x1xf32>
    %80 = math.rsqrt %79 : vector<8x1xf32>
    %81 = arith.mulf %77, %80 : vector<8x1xf32>
    %cst_6 = arith.constant 5.000000e-01 : f32
    %82 = vector.broadcast %cst_6 : f32 to vector<8x1xf32>
    %83 = arith.subf %81, %82 : vector<8x1xf32>
    %84 = arith.mulf %4, %80 : vector<8x1xf32>
    %85 = arith.mulf %5, %80 : vector<8x1xf32>
    %86 = arith.mulf %6, %80 : vector<8x1xf32>
    %87 = arith.mulf %7, %7 : vector<8x1xf32>
    %88 = arith.mulf %8, %8 : vector<8x1xf32>
    %89 = arith.addf %87, %88 : vector<8x1xf32>
    %90 = arith.mulf %9, %9 : vector<8x1xf32>
    %91 = arith.addf %89, %90 : vector<8x1xf32>
    %cst_7 = arith.constant 9.99999996E-13 : f32
    %92 = vector.broadcast %cst_7 : f32 to vector<8x1xf32>
    %93 = arith.addf %91, %92 : vector<8x1xf32>
    %94 = math.rsqrt %93 : vector<8x1xf32>
    %95 = arith.mulf %91, %94 : vector<8x1xf32>
    %cst_8 = arith.constant 5.000000e-01 : f32
    %96 = vector.broadcast %cst_8 : f32 to vector<8x1xf32>
    %97 = arith.subf %95, %96 : vector<8x1xf32>
    %98 = arith.mulf %7, %94 : vector<8x1xf32>
    %99 = arith.mulf %8, %94 : vector<8x1xf32>
    %100 = arith.mulf %9, %94 : vector<8x1xf32>
    %101 = arith.mulf %84, %26 : vector<8x1xf32>
    %102 = arith.mulf %85, %27 : vector<8x1xf32>
    %103 = arith.addf %101, %102 : vector<8x1xf32>
    %104 = arith.mulf %86, %28 : vector<8x1xf32>
    %105 = arith.addf %103, %104 : vector<8x1xf32>
    %106 = arith.mulf %98, %26 : vector<8x1xf32>
    %107 = arith.mulf %99, %27 : vector<8x1xf32>
    %108 = arith.addf %106, %107 : vector<8x1xf32>
    %109 = arith.mulf %100, %28 : vector<8x1xf32>
    %110 = arith.addf %108, %109 : vector<8x1xf32>
    %111 = arith.subf %105, %110 : vector<8x1xf32>
    %cst_9 = arith.constant 2.000000e+00 : f32
    %112 = vector.broadcast %cst_9 : f32 to vector<8x1xf32>
    %113 = arith.addf %111, %112 : vector<8x1xf32>
    %114 = math.absf %83 : vector<8x1xf32>
    %115 = math.absf %97 : vector<8x1xf32>
    %116 = arith.addf %114, %115 : vector<8x1xf32>
    %cst_10 = arith.constant 8.000000e-01 : f32
    %117 = vector.broadcast %cst_10 : f32 to vector<8x1xf32>
    %118 = arith.mulf %117, %25 : vector<8x1xf32>
    %c0_11 = arith.constant 0 : index
    %c0_12 = arith.constant 0 : index
    %119 = vector.load %arg2[%c0_11, %c0_12] : memref<8x256xf32, #tpu.memory_space<vmem>>, vector<8x256xf32>
    %120 = vector.extract_strided_slice %119 {offsets = [0, 0], sizes = [1, 256], strides = [1, 1]} : vector<8x256xf32> to vector<1x256xf32>
    %121 = vector.extract_strided_slice %119 {offsets = [1, 0], sizes = [1, 256], strides = [1, 1]} : vector<8x256xf32> to vector<1x256xf32>
    %122 = vector.extract_strided_slice %119 {offsets = [2, 0], sizes = [1, 256], strides = [1, 1]} : vector<8x256xf32> to vector<1x256xf32>
    %123 = vector.extract_strided_slice %119 {offsets = [3, 0], sizes = [1, 256], strides = [1, 1]} : vector<8x256xf32> to vector<1x256xf32>
    %124 = vector.broadcast %123 : vector<1x256xf32> to vector<8x256xf32>
    %125 = vector.broadcast %118 : vector<8x1xf32> to vector<8x256xf32>
    %126 = arith.mulf %124, %125 : vector<8x256xf32>
    %127 = vector.broadcast %121 : vector<1x256xf32> to vector<8x256xf32>
    %128 = arith.addf %127, %126 : vector<8x256xf32>
    %129 = vector.broadcast %46 : vector<8x1xf32> to vector<8x256xf32>
    %130 = vector.broadcast %120 : vector<1x256xf32> to vector<8x256xf32>
    %131 = arith.mulf %129, %130 : vector<8x256xf32>
    %132 = vector.broadcast %26 : vector<8x1xf32> to vector<8x256xf32>
    %133 = arith.mulf %132, %128 : vector<8x256xf32>
    %134 = arith.addf %131, %133 : vector<8x256xf32>
    %135 = vector.broadcast %51 : vector<8x1xf32> to vector<8x256xf32>
    %136 = vector.broadcast %122 : vector<1x256xf32> to vector<8x256xf32>
    %137 = arith.mulf %135, %136 : vector<8x256xf32>
    %138 = arith.addf %134, %137 : vector<8x256xf32>
    %139 = vector.broadcast %62 : vector<8x1xf32> to vector<8x256xf32>
    %140 = arith.addf %138, %139 : vector<8x256xf32>
    %141 = vector.broadcast %47 : vector<8x1xf32> to vector<8x256xf32>
    %142 = vector.broadcast %120 : vector<1x256xf32> to vector<8x256xf32>
    %143 = arith.mulf %141, %142 : vector<8x256xf32>
    %144 = vector.broadcast %27 : vector<8x1xf32> to vector<8x256xf32>
    %145 = arith.mulf %144, %128 : vector<8x256xf32>
    %146 = arith.addf %143, %145 : vector<8x256xf32>
    %147 = vector.broadcast %54 : vector<8x1xf32> to vector<8x256xf32>
    %148 = vector.broadcast %122 : vector<1x256xf32> to vector<8x256xf32>
    %149 = arith.mulf %147, %148 : vector<8x256xf32>
    %150 = arith.addf %146, %149 : vector<8x256xf32>
    %151 = vector.broadcast %67 : vector<8x1xf32> to vector<8x256xf32>
    %152 = arith.addf %150, %151 : vector<8x256xf32>
    %153 = vector.broadcast %48 : vector<8x1xf32> to vector<8x256xf32>
    %154 = vector.broadcast %120 : vector<1x256xf32> to vector<8x256xf32>
    %155 = arith.mulf %153, %154 : vector<8x256xf32>
    %156 = vector.broadcast %28 : vector<8x1xf32> to vector<8x256xf32>
    %157 = arith.mulf %156, %128 : vector<8x256xf32>
    %158 = arith.addf %155, %157 : vector<8x256xf32>
    %159 = vector.broadcast %57 : vector<8x1xf32> to vector<8x256xf32>
    %160 = vector.broadcast %122 : vector<1x256xf32> to vector<8x256xf32>
    %161 = arith.mulf %159, %160 : vector<8x256xf32>
    %162 = arith.addf %158, %161 : vector<8x256xf32>
    %163 = vector.broadcast %72 : vector<8x1xf32> to vector<8x256xf32>
    %164 = arith.addf %162, %163 : vector<8x256xf32>
    %165 = arith.mulf %140, %140 : vector<8x256xf32>
    %166 = arith.mulf %152, %152 : vector<8x256xf32>
    %167 = arith.addf %165, %166 : vector<8x256xf32>
    %168 = arith.mulf %164, %164 : vector<8x256xf32>
    %169 = arith.addf %167, %168 : vector<8x256xf32>
    %cst_13 = arith.constant 9.99999996E-13 : f32
    %170 = vector.broadcast %cst_13 : f32 to vector<8x256xf32>
    %171 = arith.addf %169, %170 : vector<8x256xf32>
    %172 = math.rsqrt %171 : vector<8x256xf32>
    %173 = arith.mulf %169, %172 : vector<8x256xf32>
    %cst_14 = arith.constant 4.000000e-01 : f32
    %174 = vector.broadcast %cst_14 : f32 to vector<8x256xf32>
    %175 = arith.subf %174, %173 : vector<8x256xf32>
    %cst_15 = arith.constant 0.000000e+00 : f32
    %176 = vector.broadcast %cst_15 : f32 to vector<8x256xf32>
    %177 = arith.maximumf %175, %176 : vector<8x256xf32>
    %cst_16 = arith.constant dense<0.000000e+00> : vector<8xf32>
    %178 = vector.multi_reduction <add>, %177, %cst_16 [1] : vector<8x256xf32> to vector<8xf32>
    %179 = vector.shape_cast %178 : vector<8xf32> to vector<8x1xf32>
    %cst_17 = arith.constant 1.250000e+00 : f32
    %180 = vector.broadcast %cst_17 : f32 to vector<8x1xf32>
    %181 = arith.mulf %179, %180 : vector<8x1xf32>
    %182 = vector.extract_strided_slice %1 {offsets = [0, 0], sizes = [8, 3], strides = [1, 1]} : vector<8x10xf32> to vector<8x3xf32>
    %183 = arith.mulf %182, %182 : vector<8x3xf32>
    %cst_18 = arith.constant dense<0.000000e+00> : vector<8xf32>
    %184 = vector.multi_reduction <add>, %183, %cst_18 [1] : vector<8x3xf32> to vector<8xf32>
    %185 = vector.shape_cast %184 : vector<8xf32> to vector<8x1xf32>
    %cst_19 = arith.constant 9.99999996E-13 : f32
    %186 = vector.broadcast %cst_19 : f32 to vector<8x1xf32>
    %187 = arith.addf %185, %186 : vector<8x1xf32>
    %188 = math.rsqrt %187 : vector<8x1xf32>
    %189 = arith.mulf %185, %188 : vector<8x1xf32>
    %cst_20 = arith.constant 1.000000e+02 : f32
    %190 = vector.broadcast %cst_20 : f32 to vector<8x1xf32>
    %191 = arith.mulf %190, %189 : vector<8x1xf32>
    %192 = vector.extract_strided_slice %1 {offsets = [0, 3], sizes = [8, 3], strides = [1, 1]} : vector<8x10xf32> to vector<8x3xf32>
    %193 = arith.mulf %192, %192 : vector<8x3xf32>
    %cst_21 = arith.constant dense<0.000000e+00> : vector<8xf32>
    %194 = vector.multi_reduction <add>, %193, %cst_21 [1] : vector<8x3xf32> to vector<8xf32>
    %195 = vector.shape_cast %194 : vector<8xf32> to vector<8x1xf32>
    %cst_22 = arith.constant 9.99999996E-13 : f32
    %196 = vector.broadcast %cst_22 : f32 to vector<8x1xf32>
    %197 = arith.addf %195, %196 : vector<8x1xf32>
    %198 = math.rsqrt %197 : vector<8x1xf32>
    %199 = arith.mulf %195, %198 : vector<8x1xf32>
    %cst_23 = arith.constant 1.000000e+02 : f32
    %200 = vector.broadcast %cst_23 : f32 to vector<8x1xf32>
    %201 = arith.mulf %200, %199 : vector<8x1xf32>
    %202 = arith.addf %191, %201 : vector<8x1xf32>
    %203 = vector.extract_strided_slice %1 {offsets = [0, 9], sizes = [8, 1], strides = [1, 1]} : vector<8x10xf32> to vector<8x1xf32>
    %204 = math.absf %203 : vector<8x1xf32>
    %cst_24 = arith.constant 1.000000e+02 : f32
    %205 = vector.broadcast %cst_24 : f32 to vector<8x1xf32>
    %206 = arith.mulf %205, %204 : vector<8x1xf32>
    %207 = arith.addf %202, %206 : vector<8x1xf32>
    %208 = vector.extract_strided_slice %1 {offsets = [0, 6], sizes = [8, 3], strides = [1, 1]} : vector<8x10xf32> to vector<8x3xf32>
    %209 = arith.mulf %208, %208 : vector<8x3xf32>
    %cst_25 = arith.constant dense<0.000000e+00> : vector<8xf32>
    %210 = vector.multi_reduction <add>, %209, %cst_25 [1] : vector<8x3xf32> to vector<8xf32>
    %211 = vector.shape_cast %210 : vector<8xf32> to vector<8x1xf32>
    %cst_26 = arith.constant 9.99999996E-13 : f32
    %212 = vector.broadcast %cst_26 : f32 to vector<8x1xf32>
    %213 = arith.addf %211, %212 : vector<8x1xf32>
    %214 = math.rsqrt %213 : vector<8x1xf32>
    %215 = arith.mulf %211, %214 : vector<8x1xf32>
    %cst_27 = arith.constant 1.000000e+02 : f32
    %216 = vector.broadcast %cst_27 : f32 to vector<8x1xf32>
    %217 = arith.mulf %216, %215 : vector<8x1xf32>
    %218 = arith.addf %207, %217 : vector<8x1xf32>
    %cst_28 = arith.constant 1.000000e+02 : f32
    %219 = vector.broadcast %cst_28 : f32 to vector<8x1xf32>
    %220 = arith.mulf %219, %113 : vector<8x1xf32>
    %cst_29 = arith.constant 2.000000e+01 : f32
    %221 = vector.broadcast %cst_29 : f32 to vector<8x1xf32>
    %222 = arith.mulf %221, %116 : vector<8x1xf32>
    %223 = arith.addf %220, %222 : vector<8x1xf32>
    %cst_30 = arith.constant 1.000000e+01 : f32
    %224 = vector.broadcast %cst_30 : f32 to vector<8x1xf32>
    %225 = arith.mulf %224, %181 : vector<8x1xf32>
    %226 = arith.addf %223, %225 : vector<8x1xf32>
    %cst_31 = arith.constant 2.000000e+00 : f32
    %227 = vector.broadcast %cst_31 : f32 to vector<8x1xf32>
    %228 = arith.mulf %227, %218 : vector<8x1xf32>
    %229 = arith.addf %226, %228 : vector<8x1xf32>
    %cst_32 = arith.constant 1.000000e+02 : f32
    %230 = vector.broadcast %cst_32 : f32 to vector<8x1xf32>
    %231 = arith.mulf %230, %113 : vector<8x1xf32>
    %cst_33 = arith.constant 2.000000e+01 : f32
    %232 = vector.broadcast %cst_33 : f32 to vector<8x1xf32>
    %233 = arith.mulf %232, %116 : vector<8x1xf32>
    %234 = arith.addf %231, %233 : vector<8x1xf32>
    %cst_34 = arith.constant 0.000000e+00 : f32
    %235 = vector.broadcast %cst_34 : f32 to vector<8x1xf32>
    %236 = arith.mulf %235, %218 : vector<8x1xf32>
    %237 = arith.addf %234, %236 : vector<8x1xf32>
    %cst_35 = arith.constant 0.000000e+00 : f32
    %238 = vector.broadcast %cst_35 : f32 to vector<8x1xf32>
    %239 = arith.cmpf oeq, %181, %238 : vector<8x1xf32>
    %cst_36 = arith.constant 1.000000e+30 : f32
    %240 = vector.broadcast %cst_36 : f32 to vector<8x1xf32>
    %241 = arith.select %239, %237, %240 : vector<8x1xi1>, vector<8x1xf32>
    %242 = tpu.iota {dimensions = array<i32: 1>} : vector<8x128xi32>
    %c0_i32 = arith.constant 0 : i32
    %243 = vector.broadcast %c0_i32 : i32 to vector<8x128xi32>
    %244 = arith.cmpi eq, %242, %243 : vector<8x128xi32>
    %cst_37 = arith.constant 0.000000e+00 : f32
    %245 = vector.broadcast %cst_37 : f32 to vector<8x128xf32>
    %246 = vector.shape_cast %229 : vector<8x1xf32> to vector<8x1xf32>
    %247 = vector.broadcast %246 : vector<8x1xf32> to vector<8x128xf32>
    %248 = arith.select %244, %247, %245 : vector<8x128xi1>, vector<8x128xf32>
    %c1_i32 = arith.constant 1 : i32
    %249 = vector.broadcast %c1_i32 : i32 to vector<8x128xi32>
    %250 = arith.cmpi eq, %242, %249 : vector<8x128xi32>
    %251 = vector.shape_cast %116 : vector<8x1xf32> to vector<8x1xf32>
    %252 = vector.broadcast %251 : vector<8x1xf32> to vector<8x128xf32>
    %253 = arith.select %250, %252, %248 : vector<8x128xi1>, vector<8x128xf32>
    %c2_i32 = arith.constant 2 : i32
    %254 = vector.broadcast %c2_i32 : i32 to vector<8x128xi32>
    %255 = arith.cmpi eq, %242, %254 : vector<8x128xi32>
    %256 = vector.shape_cast %113 : vector<8x1xf32> to vector<8x1xf32>
    %257 = vector.broadcast %256 : vector<8x1xf32> to vector<8x128xf32>
    %258 = arith.select %255, %257, %253 : vector<8x128xi1>, vector<8x128xf32>
    %c3_i32 = arith.constant 3 : i32
    %259 = vector.broadcast %c3_i32 : i32 to vector<8x128xi32>
    %260 = arith.cmpi eq, %242, %259 : vector<8x128xi32>
    %261 = vector.shape_cast %181 : vector<8x1xf32> to vector<8x1xf32>
    %262 = vector.broadcast %261 : vector<8x1xf32> to vector<8x128xf32>
    %263 = arith.select %260, %262, %258 : vector<8x128xi1>, vector<8x128xf32>
    %c4_i32 = arith.constant 4 : i32
    %264 = vector.broadcast %c4_i32 : i32 to vector<8x128xi32>
    %265 = arith.cmpi eq, %242, %264 : vector<8x128xi32>
    %266 = vector.shape_cast %218 : vector<8x1xf32> to vector<8x1xf32>
    %267 = vector.broadcast %266 : vector<8x1xf32> to vector<8x128xf32>
    %268 = arith.select %265, %267, %263 : vector<8x128xi1>, vector<8x128xf32>
    %cst_38 = arith.constant dense<0.000000e+00> : vector<128xf32>
    %269 = vector.multi_reduction <add>, %268, %cst_38 [0] : vector<8x128xf32> to vector<128xf32>
    %270 = vector.shape_cast %269 : vector<128xf32> to vector<1x128xf32>
    %cst_39 = arith.constant 1.250000e-01 : f32
    %271 = vector.broadcast %cst_39 : f32 to vector<1x128xf32>
    %272 = arith.mulf %270, %271 : vector<1x128xf32>
    %c0_i32_40 = arith.constant 0 : i32
    %273 = vector.broadcast %c0_i32_40 : i32 to vector<8x128xi32>
    %274 = arith.cmpi eq, %242, %273 : vector<8x128xi32>
    %cst_41 = arith.constant 1.000000e+30 : f32
    %275 = vector.broadcast %cst_41 : f32 to vector<8x128xf32>
    %276 = vector.shape_cast %241 : vector<8x1xf32> to vector<8x1xf32>
    %277 = vector.broadcast %276 : vector<8x1xf32> to vector<8x128xf32>
    %278 = arith.select %274, %277, %275 : vector<8x128xi1>, vector<8x128xf32>
    %c1_i32_42 = arith.constant 1 : i32
    %279 = vector.broadcast %c1_i32_42 : i32 to vector<8x128xi32>
    %280 = arith.cmpi eq, %242, %279 : vector<8x128xi32>
    %281 = vector.shape_cast %229 : vector<8x1xf32> to vector<8x1xf32>
    %282 = vector.broadcast %281 : vector<8x1xf32> to vector<8x128xf32>
    %283 = arith.select %280, %282, %278 : vector<8x128xi1>, vector<8x128xf32>
    %cst_43 = arith.constant dense<0x7F800000> : vector<128xf32>
    %284 = vector.multi_reduction <minimumf>, %283, %cst_43 [0] : vector<8x128xf32> to vector<128xf32>
    %285 = vector.shape_cast %284 : vector<128xf32> to vector<1x128xf32>
    %286 = tpu.iota {dimensions = array<i32: 0>} : vector<8x128xi32>
    %287 = arith.sitofp %286 : vector<8x128xi32> to vector<8x128xf32>
    %288 = vector.broadcast %285 : vector<1x128xf32> to vector<8x128xf32>
    %289 = arith.cmpf oeq, %283, %288 : vector<8x128xf32>
    %cst_44 = arith.constant 1.000000e+30 : f32
    %290 = vector.broadcast %cst_44 : f32 to vector<8x128xf32>
    %291 = arith.select %289, %287, %290 : vector<8x128xi1>, vector<8x128xf32>
    %cst_45 = arith.constant dense<0x7F800000> : vector<128xf32>
    %292 = vector.multi_reduction <minimumf>, %291, %cst_45 [0] : vector<8x128xf32> to vector<128xf32>
    %293 = vector.shape_cast %292 : vector<128xf32> to vector<1x128xf32>
    %294 = vector.extract_strided_slice %285 {offsets = [0, 0], sizes = [1, 1], strides = [1, 1]} : vector<1x128xf32> to vector<1x1xf32>
    %295 = vector.extract_strided_slice %285 {offsets = [0, 1], sizes = [1, 1], strides = [1, 1]} : vector<1x128xf32> to vector<1x1xf32>
    %296 = vector.extract_strided_slice %293 {offsets = [0, 0], sizes = [1, 1], strides = [1, 1]} : vector<1x128xf32> to vector<1x1xf32>
    %297 = vector.extract_strided_slice %293 {offsets = [0, 1], sizes = [1, 1], strides = [1, 1]} : vector<1x128xf32> to vector<1x1xf32>
    %cst_46 = arith.constant 5.000000e+29 : f32
    %298 = vector.broadcast %cst_46 : f32 to vector<1x1xf32>
    %299 = arith.cmpf olt, %294, %298 : vector<1x1xf32>
    %300 = arith.select %299, %294, %295 : vector<1x1xi1>, vector<1x1xf32>
    %301 = arith.select %299, %296, %297 : vector<1x1xi1>, vector<1x1xf32>
    %302 = tpu.iota {dimensions = array<i32: 1>} : vector<8x128xi32>
    %c5_i32 = arith.constant 5 : i32
    %303 = vector.broadcast %c5_i32 : i32 to vector<8x128xi32>
    %304 = arith.cmpi eq, %302, %303 : vector<8x128xi32>
    %305 = vector.shape_cast %300 : vector<1x1xf32> to vector<1x1xf32>
    %306 = vector.broadcast %305 : vector<1x1xf32> to vector<8x128xf32>
    %307 = vector.shape_cast %272 : vector<1x128xf32> to vector<1x128xf32>
    %308 = vector.broadcast %307 : vector<1x128xf32> to vector<8x128xf32>
    %309 = arith.select %304, %306, %308 : vector<8x128xi1>, vector<8x128xf32>
    %c6_i32 = arith.constant 6 : i32
    %310 = vector.broadcast %c6_i32 : i32 to vector<8x128xi32>
    %311 = arith.cmpi eq, %302, %310 : vector<8x128xi32>
    %312 = vector.shape_cast %301 : vector<1x1xf32> to vector<1x1xf32>
    %313 = vector.broadcast %312 : vector<1x1xf32> to vector<8x128xf32>
    %314 = arith.select %311, %313, %309 : vector<8x128xi1>, vector<8x128xf32>
    %c0_47 = arith.constant 0 : index
    %c0_48 = arith.constant 0 : index
    %315 = vector.load %arg3[%c0_47, %c0_48] : memref<8x128xf32, #tpu.memory_space<vmem>>, vector<8x128xf32>
    tpu.vector_store %arg3[%c0_47, %c0_48], %314 {strides = array<i32>} : memref<8x128xf32, #tpu.memory_space<vmem>>, vector<8x128xf32>,
    return
  }
  func.func @transform_0(%arg0: i32) -> (i32, i32) {
    %c0_i32 = arith.constant 0 : i32
    %c0_i32_0 = arith.constant 0 : i32
    %c0_i32_1 = arith.constant 0 : i32
    return %c0_i32, %c0_i32_0 : i32, i32
  }
  func.func @transform_1(%arg0: i32) -> (i32, i32) {
    %c0_i32 = arith.constant 0 : i32
    %c0_i32_0 = arith.constant 0 : i32
    %c0_i32_1 = arith.constant 0 : i32
    return %c0_i32, %c0_i32_0 : i32, i32
  }
  func.func @transform_2(%arg0: i32) -> (i32, i32) {
    %c0_i32 = arith.constant 0 : i32
    %c0_i32_0 = arith.constant 0 : i32
    %c0_i32_1 = arith.constant 0 : i32
    return %c0_i32, %c0_i32_0 : i32, i32
  }
}

</mosaic_0001>

<llo_original>
// kernel: panda_refine_forward.1
$region0: #{panda_refine_forward.1}
  #allocation0 [shape = 'u32[]', space=smem, size = 0x4, offset = 0x4, fixed_abs, tag = 'smem constant byte address 0x4 - core index']
  #allocation1 [shape = 'u32[144,128]{1,0:T(1,128)}', space=vmem, size = 0x12000, scoped, tag = 'internal scratch']
  %s0 = inlined_call_operand.hbm [shape: f32[8,20], index: 0, kind: input, shape index: {}]
  %s1 = inlined_call_operand.hbm [shape: f32[8,256], index: 1, kind: input, shape index: {}]
  %s2 = inlined_call_operand.vmem [shape: f32[8,128], index: 2, kind: output, shape index: {}]
  %s3 = sld [smem:[#allocation0]]
  $region26: #{panda_refine_forward.1} parent=0
    _
  %s5 = ssub.s32 1, %s3
  %s6 = scalar_select 0, %s5, %s3
  $region1: #{panda_refine_forward.1} parent=0
    #allocation2 [shape = 'u8[4096]{0}', space=vmem, size = 0x1000, scoped, tag = 'input window, operand 0, single buffered']
    #allocation3 [shape = 's32[1]{0}', space=sflag, size = 0x4, scoped, tag = 'scoped memory for panda_refine_forward.1']
    #allocation4 [shape = 'u8[8192]{0}', space=vmem, size = 0x2000, scoped, tag = 'input window, operand 1, single buffered']
    #allocation5 [shape = 's32[1]{0}', space=sflag, size = 0x4, scoped, tag = 'scoped memory for panda_refine_forward.1']
    %7 = vsyncpa [#allocation3], 0
    %8 = vsyncpa [#allocation5], 0
    // Predicated region
    $region2: #{panda_refine_forward.1} parent=1 // pred_check
      _
    $region3: #{panda_refine_forward.1} parent=1 // pred_check_branch
      %10 = sbr.rel (0) target = $region5
    $region4: #{panda_refine_forward.1} parent=1 // pred_region
      %s12 = ssub.s32 128, 128
      %13 = vsyncadd [#allocation3], %s12
      %s15 = sshll.u32 [#allocation2], 4
      %s16 = int_to_ptr.vmem [resolvable:$true] %s15
      %18 = dma.hbm_to_vmem [thread:$0]  %s0, 128, %s16, [#allocation3]
    $region5: #{panda_refine_forward.1} parent=1 // pred_fallthru
      _
    // Predicated region
    $region6: #{panda_refine_forward.1} parent=1 // pred_check
      _
    $region7: #{panda_refine_forward.1} parent=1 // pred_check_branch
      %20 = sbr.rel (0) target = $region9
    $region8: #{panda_refine_forward.1} parent=1 // pred_region
      %s22 = ssub.s32 256, 256
      %23 = vsyncadd [#allocation5], %s22
      %s25 = sshll.u32 [#allocation4], 4
      %s26 = int_to_ptr.vmem [resolvable:$true] %s25
      %28 = dma.hbm_to_vmem [thread:$0]  %s1, 256, %s26, [#allocation5]
    $region9: #{panda_refine_forward.1} parent=1 // pred_fallthru
      _
    // Predicated region
    $region10: #{panda_refine_forward.1} parent=1 // pred_check
      _
    $region11: #{panda_refine_forward.1} parent=1 // pred_check_branch
      %30 = sbr.rel (0) target = $region13
    $region12: #{panda_refine_forward.1} parent=1 // pred_region
      %31 = dma.done [#allocation3], 128
    $region13: #{panda_refine_forward.1} parent=1 // pred_fallthru
      _
    // Predicated region
    $region14: #{panda_refine_forward.1} parent=1 // pred_check
      _
    $region15: #{panda_refine_forward.1} parent=1 // pred_check_branch
      %33 = sbr.rel (0) target = $region17
    $region16: #{panda_refine_forward.1} parent=1 // pred_region
      %34 = dma.done [#allocation5], 256
    $region17: #{panda_refine_forward.1} parent=1 // pred_fallthru
      _
    %v35 = vld [vmem:[#allocation2] sm:$0xff]
    %37 = vrot.lane.b32.xlu0 %v35, 10
    %v38 = vpop.permute.xlu0 %37
    %v40 = vadd.f32 %v35, %v38
    %42 = vrot.lane.b32.xlu0 %v40, 3
    %v43 = vpop.permute.xlu0 %42
    %v45 = vsub.f32 %v40, %v43
    %v46 = vmul.f32 %v45, %v45
    %48 = vrot.lane.b32.xlu0 %v46, 127
    %v49 = vpop.permute.xlu0 %48
    %v51 = vadd.f32 %v46, %v49
    %52 = vrot.lane.b32.xlu0 %v46, 126
    %v53 = vpop.permute.xlu0 %52
    %v55 = vadd.f32 %v51, %v53
    %v56 = vadd.f32 %v55, 1e-12
    %v57 = vrsqrt.pop %v56
    %v58 = vmul.f32 %v55, %v57
    %v59 = vmul.f32 %v45, %v57
    %61 = vrot.lane.b32.xlu0 %v57, 1
    %v62 = vpop.permute.xlu0 %61
    %v64 = vmul.f32 %v45, %v62
    %65 = vrot.lane.b32.xlu0 %v57, 2
    %v66 = vpop.permute.xlu0 %65
    %v68 = vmul.f32 %v45, %v66
    %69 = vrot.lane.b32.xlu0 %v40, 124
    %v70 = vpop.permute.xlu0 %69
    %v72 = vmul.f32 %v64, %v70
    %73 = vrot.lane.b32.xlu0 %v40, 126
    %v74 = vpop.permute.xlu0 %73
    %v76 = vmul.f32 %v68, %v74
    %78 = vrot.lane.b32.xlu0 %v76, 127
    %v79 = vpop.permute.xlu0 %78
    %v81 = vsub.f32 %v72, %v79
    %82 = vrot.lane.b32.xlu0 %v40, 127
    %v83 = vpop.permute.xlu0 %82
    %v85 = vmul.f32 %v68, %v83
    %86 = vrot.lane.b32.xlu0 %v40, 123
    %v87 = vpop.permute.xlu0 %86
    %v89 = vmul.f32 %v59, %v87
    %91 = vrot.lane.b32.xlu0 %v89, 2
    %v92 = vpop.permute.xlu0 %91
    %v94 = vsub.f32 %v85, %v92
    %v95 = vmul.f32 %v59, %v70
    %v96 = vmul.f32 %v64, %v74
    %98 = vrot.lane.b32.xlu0 %v96, 127
    %v99 = vpop.permute.xlu0 %98
    %v101 = vsub.f32 %v95, %v99
    %v102 = vmul.f32 %v81, %v81
    %v103 = vmul.f32 %v94, %v94
    %105 = vrot.lane.b32.xlu0 %v103, 127
    %v106 = vpop.permute.xlu0 %105
    %v108 = vadd.f32 %v102, %v106
    %v109 = vmul.f32 %v101, %v101
    %111 = vrot.lane.b32.xlu0 %v109, 1
    %v112 = vpop.permute.xlu0 %111
    %v114 = vadd.f32 %v108, %v112
    %v115 = vadd.f32 %v114, 1e-12
    %v116 = vrsqrt.pop %v115
    %v117 = vmul.f32 %v81, %v116
    %119 = vrot.lane.b32.xlu0 %v116, 1
    %v120 = vpop.permute.xlu0 %119
    %v122 = vmul.f32 %v94, %v120
    %123 = vrot.lane.b32.xlu0 %v116, 127
    %v124 = vpop.permute.xlu0 %123
    %v126 = vmul.f32 %v101, %v124
    %v127 = vmul.f32 %v122, %v68
    %129 = vrot.lane.b32.xlu0 %v64, 127
    %v130 = vpop.permute.xlu0 %129
    %v132 = vmul.f32 %v126, %v130
    %134 = vrot.lane.b32.xlu0 %v132, 2
    %v135 = vpop.permute.xlu0 %134
    %v137 = vsub.f32 %v127, %v135
    %v138 = vmul.f32 %v126, %v59
    %140 = vrot.lane.b32.xlu0 %v68, 127
    %v141 = vpop.permute.xlu0 %140
    %v143 = vmul.f32 %v117, %v141
    %145 = vrot.lane.b32.xlu0 %v143, 127
    %v146 = vpop.permute.xlu0 %145
    %v148 = vsub.f32 %v138, %v146
    %v149 = vmul.f32 %v117, %v64
    %151 = vrot.lane.b32.xlu0 %v59, 2
    %v152 = vpop.permute.xlu0 %151
    %v154 = vmul.f32 %v122, %v152
    %156 = vrot.lane.b32.xlu0 %v154, 127
    %v157 = vpop.permute.xlu0 %156
    %v159 = vsub.f32 %v149, %v157
    %160 = vrot.lane.b32.xlu0 %v40, 125
    %v161 = vpop.permute.xlu0 %160
    %v163 = vadd.f32 %v40, %v161
    %v164 = vmul.f32 %v163, 0.4
    %v165 = vmul.f32 %v137, %v70
    %167 = vrot.lane.b32.xlu0 %v165, 123
    %v168 = vpop.permute.xlu0 %167
    %v170 = vsub.f32 %v164, %v168
    %171 = vrot.lane.b32.xlu0 %v40, 122
    %v172 = vpop.permute.xlu0 %171
    %v174 = vmul.f32 %v148, %v172
    %176 = vrot.lane.b32.xlu0 %v174, 126
    %v177 = vpop.permute.xlu0 %176
    %v179 = vsub.f32 %v164, %v177
    %v180 = vmul.f32 %v159, %v87
    %182 = vrot.lane.b32.xlu0 %v180, 126
    %v183 = vpop.permute.xlu0 %182
    %v185 = vsub.f32 %v164, %v183
    %v186 = vmul.f32 %v40, %v40
    %188 = vrot.lane.b32.xlu0 %v186, 127
    %v189 = vpop.permute.xlu0 %188
    %v191 = vadd.f32 %v186, %v189
    %192 = vrot.lane.b32.xlu0 %v186, 126
    %v193 = vpop.permute.xlu0 %192
    %v195 = vadd.f32 %v191, %v193
    %v196 = vadd.f32 %v195, 1e-12
    %v197 = vrsqrt.pop %v196
    %v198 = vmul.f32 %v195, %v197
    %v199 = vsub.f32 %v198, 0.5
    %v200 = vmul.f32 %v40, %v197
    %202 = vrot.lane.b32.xlu0 %v197, 1
    %v203 = vpop.permute.xlu0 %202
    %v205 = vmul.f32 %v40, %v203
    %206 = vrot.lane.b32.xlu0 %v197, 2
    %v207 = vpop.permute.xlu0 %206
    %v209 = vmul.f32 %v40, %v207
    %210 = vrot.lane.b32.xlu0 %v59, 125
    %v211 = vpop.permute.xlu0 %210
    %v213 = vmul.f32 %v200, %v211
    %214 = vrot.lane.b32.xlu0 %v64, 125
    %v215 = vpop.permute.xlu0 %214
    %v217 = vmul.f32 %v205, %v215
    %219 = vrot.lane.b32.xlu0 %v217, 127
    %v220 = vpop.permute.xlu0 %219
    %v222 = vadd.f32 %v213, %v220
    %223 = vrot.lane.b32.xlu0 %v68, 125
    %v224 = vpop.permute.xlu0 %223
    %v226 = vmul.f32 %v209, %v224
    %228 = vrot.lane.b32.xlu0 %v226, 126
    %v229 = vpop.permute.xlu0 %228
    %v231 = vadd.f32 %v222, %v229
    %v232 = vmul.f32 %v200, %v59
    %v233 = vmul.f32 %v205, %v64
    %235 = vrot.lane.b32.xlu0 %v233, 127
    %v236 = vpop.permute.xlu0 %235
    %v238 = vadd.f32 %v232, %v236
    %v239 = vmul.f32 %v209, %v68
    %241 = vrot.lane.b32.xlu0 %v239, 126
    %v242 = vpop.permute.xlu0 %241
    %v244 = vadd.f32 %v238, %v242
    %246 = vrot.lane.b32.xlu0 %v244, 125
    %v247 = vpop.permute.xlu0 %246
    %v249 = vsub.f32 %v231, %v247
    %v250 = vadd.f32 %v249, 2.0
    %v251 = vand.u32 2147483647, %v199
    %253 = vrot.lane.b32.xlu0 %v251, 125
    %v254 = vpop.permute.xlu0 %253
    %v256 = vadd.f32 %v251, %v254
    %v257 = vmul.f32 %v58, 0.8
    %v258 = vld [vmem:[#allocation4] sm:$0xff]
    %v259 = vld [vmem:[#allocation4 + $0x8] sm:$0xff]
    %v260 = vlaneseq
    %v261 = vshrl.u32 %v260, 7
    %v262 = vsub.s32 3, %v261
    %v263 = vrot.slane %v258, %v262
    %v264 = vlaneseq
    %v265 = vshrl.u32 %v264, 7
    %v266 = vsub.s32 3, %v265
    %v267 = vrot.slane %v259, %v266
    %269 = vset.pattern.permute.xlu0 13
    %270 = vperm.xlu0 %269, %v257
    %v271 = vpop.permute.xlu0 %270
    %v273 = vmul.f32 %v263, %v271
    %v274 = vmul.f32 %v267, %v271
    %v275 = vlaneseq
    %v276 = vshrl.u32 %v275, 7
    %v277 = vsub.s32 1, %v276
    %v278 = vrot.slane %v258, %v277
    %v279 = vlaneseq
    %v280 = vshrl.u32 %v279, 7
    %v281 = vsub.s32 1, %v280
    %v282 = vrot.slane %v259, %v281
    %v283 = vadd.f32 %v278, %v273
    %v284 = vadd.f32 %v282, %v274
    %286 = vset.pattern.permute.xlu0 14
    %287 = vperm.xlu0 %286, %v117
    %v288 = vpop.permute.xlu0 %287
    %v290 = vlaneseq
    %v291 = vshrl.u32 %v290, 7
    %v292 = vsub.s32 0, %v291
    %v293 = vrot.slane %v258, %v292
    %v294 = vlaneseq
    %v295 = vshrl.u32 %v294, 7
    %v296 = vsub.s32 0, %v295
    %v297 = vrot.slane %v259, %v296
    %v298 = vmul.f32 %v288, %v293
    %v299 = vmul.f32 %v288, %v297
    %300 = vset.pattern.permute.xlu0 13
    %301 = vperm.xlu0 %300, %v59
    %v302 = vpop.permute.xlu0 %301
    %v304 = vmul.f32 %v302, %v283
    %v305 = vmul.f32 %v302, %v284
    %v306 = vadd.f32 %v298, %v304
    %v307 = vadd.f32 %v299, %v305
    %309 = vset.pattern.permute.xlu0 15
    %310 = vperm.xlu0 %309, %v137
    %v311 = vpop.permute.xlu0 %310
    %v313 = vlaneseq
    %v314 = vshrl.u32 %v313, 7
    %v315 = vsub.s32 2, %v314
    %v316 = vrot.slane %v258, %v315
    %v317 = vlaneseq
    %v318 = vshrl.u32 %v317, 7
    %v319 = vsub.s32 2, %v318
    %v320 = vrot.slane %v259, %v319
    %v321 = vmul.f32 %v311, %v316
    %v322 = vmul.f32 %v311, %v320
    %v323 = vadd.f32 %v306, %v321
    %v324 = vadd.f32 %v307, %v322
    %326 = vset.pattern.permute.xlu0 10
    %327 = vperm.xlu0 %326, %v170
    %v328 = vpop.permute.xlu0 %327
    %v330 = vadd.f32 %v323, %v328
    %v331 = vadd.f32 %v324, %v328
    %333 = vset.pattern.permute.xlu0 15
    %334 = vperm.xlu0 %333, %v122
    %v335 = vpop.permute.xlu0 %334
    %v337 = vmul.f32 %v335, %v293
    %v338 = vmul.f32 %v335, %v297
    %339 = vset.pattern.permute.xlu0 14
    %340 = vperm.xlu0 %339, %v64
    %v341 = vpop.permute.xlu0 %340
    %v343 = vmul.f32 %v341, %v283
    %v344 = vmul.f32 %v341, %v284
    %v345 = vadd.f32 %v337, %v343
    %v346 = vadd.f32 %v338, %v344
    %348 = vset.pattern.permute.xlu0 13
    %349 = vperm.xlu0 %348, %v148
    %v350 = vpop.permute.xlu0 %349
    %v352 = vmul.f32 %v350, %v316
    %v353 = vmul.f32 %v350, %v320
    %v354 = vadd.f32 %v345, %v352
    %v355 = vadd.f32 %v346, %v353
    %357 = vset.pattern.permute.xlu0 11
    %358 = vperm.xlu0 %357, %v179
    %v359 = vpop.permute.xlu0 %358
    %v361 = vadd.f32 %v354, %v359
    %v362 = vadd.f32 %v355, %v359
    %364 = vset.pattern.permute.xlu0 13
    %365 = vperm.xlu0 %364, %v126
    %v366 = vpop.permute.xlu0 %365
    %v368 = vmul.f32 %v366, %v293
    %v369 = vmul.f32 %v366, %v297
    %370 = vset.pattern.permute.xlu0 15
    %371 = vperm.xlu0 %370, %v68
    %v372 = vpop.permute.xlu0 %371
    %v374 = vmul.f32 %v372, %v283
    %v375 = vmul.f32 %v372, %v284
    %v376 = vadd.f32 %v368, %v374
    %v377 = vadd.f32 %v369, %v375
    %379 = vset.pattern.permute.xlu0 14
    %380 = vperm.xlu0 %379, %v159
    %v381 = vpop.permute.xlu0 %380
    %v383 = vmul.f32 %v381, %v316
    %v384 = vmul.f32 %v381, %v320
    %v385 = vadd.f32 %v376, %v383
    %v386 = vadd.f32 %v377, %v384
    %388 = vset.pattern.permute.xlu0 12
    %389 = vperm.xlu0 %388, %v185
    %v390 = vpop.permute.xlu0 %389
    %v392 = vadd.f32 %v385, %v390
    %v393 = vadd.f32 %v386, %v390
    %v394 = vmul.f32 %v330, %v330
    %v395 = vmul.f32 %v331, %v331
    %v396 = vmul.f32 %v361, %v361
    %v397 = vmul.f32 %v362, %v362
    %v398 = vadd.f32 %v394, %v396
    %v399 = vadd.f32 %v395, %v397
    %v400 = vmul.f32 %v392, %v392
    %v401 = vmul.f32 %v393, %v393
    %v402 = vadd.f32 %v398, %v400
    %v403 = vadd.f32 %v399, %v401
    %v404 = vadd.f32 %v402, 1e-12
    %v405 = vadd.f32 %v403, 1e-12
    %v406 = vrsqrt.pop %v404
    %v407 = vrsqrt.pop %v405
    %v408 = vmul.f32 %v402, %v406
    %v409 = vmul.f32 %v403, %v407
    %v410 = vsub.f32 0.4, %v408
    %v411 = vsub.f32 0.4, %v409
    %v412 = vmax.f32 %v410, 0.0
    %v413 = vmax.f32 %v411, 0.0
    %v414 = vadd.f32 %v412, %v413
    %415 = vadd.xlane.f32.xlu0 %v414
    %v416 = vpop.xlane.xlu0 %415
    %v417 = vmul.f32 %v416, 1.25
    %v418 = vmul.f32 %v35, %v35
    %vm419 = vcmask 23552
    %v420 = vsel %vm419, %v418, 0.0
    %421 = vadd.xlane.f32.xlu0 %v420
    %v422 = vpop.xlane.xlu0 %421
    %v423 = vadd.f32 %v422, 1e-12
    %v424 = vrsqrt.pop %v423
    %v425 = vmul.f32 %v422, %v424
    %v426 = vmul.f32 %v425, 100.0
    %428 = vrot.lane.b32.xlu0 %v418, 125
    %v429 = vpop.permute.xlu0 %428
    %v431 = vsel %vm419, %v429, 0.0
    %432 = vadd.xlane.f32.xlu0 %v431
    %v433 = vpop.xlane.xlu0 %432
    %v434 = vadd.f32 %v433, 1e-12
    %v435 = vrsqrt.pop %v434
    %v436 = vmul.f32 %v433, %v435
    %v437 = vmul.f32 %v436, 100.0
    %v438 = vadd.f32 %v426, %v437
    %v439 = vand.u32 2147483647, %v35
    %v440 = vmul.f32 %v439, 100.0
    %v441 = vadd.f32 %v438, %v440
    %442 = vrot.lane.b32.xlu0 %v418, 122
    %v443 = vpop.permute.xlu0 %442
    %v445 = vsel %vm419, %v443, 0.0
    %446 = vadd.xlane.f32.xlu0 %v445
    %v447 = vpop.xlane.xlu0 %446
    %v448 = vadd.f32 %v447, 1e-12
    %v449 = vrsqrt.pop %v448
    %v450 = vmul.f32 %v447, %v449
    %v451 = vmul.f32 %v450, 100.0
    %v452 = vadd.f32 %v441, %v451
    %v453 = vmul.f32 %v250, 100.0
    %v454 = vmul.f32 %v256, 20.0
    %v455 = vadd.f32 %v453, %v454
    %v456 = vmul.f32 %v417, 10.0
    %v457 = vadd.f32 %v455, %v456
    %v458 = vmul.f32 %v452, 2.0
    %460 = vrot.lane.b32.xlu0 %v458, 1
    %v461 = vpop.permute.xlu0 %460
    %v463 = vadd.f32 %v457, %v461
    %v464 = vmul.f32 %v452, 0.0
    %466 = vrot.lane.b32.xlu0 %v464, 1
    %v467 = vpop.permute.xlu0 %466
    %v469 = vadd.f32 %v455, %v467
    %vm470 = vcmp.eq.f32.partialorder %v417, 0.0
    %v471 = vsel %vm470, %v469, 1e+30
    %v472 = vlaneseq
    %v473 = vand.u32 %v472, 127
    %vm474 = vcmp.eq.s32.totalorder %v473, 0
    %476 = vset.pattern.permute.xlu0 10
    %477 = vperm.xlu0 %476, %v463
    %v478 = vpop.permute.xlu0 %477
    %v480 = vsel %vm474, %v478, 0.0
    %vm481 = vcmp.eq.s32.totalorder %v473, 1
    %483 = vset.pattern.permute.xlu0 10
    %484 = vperm.xlu0 %483, %v256
    %v485 = vpop.permute.xlu0 %484
    %v487 = vsel %vm481, %v485, %v480
    %vm488 = vcmp.eq.s32.totalorder %v473, 2
    %490 = vset.pattern.permute.xlu0 10
    %491 = vperm.xlu0 %490, %v250
    %v492 = vpop.permute.xlu0 %491
    %v494 = vsel %vm488, %v492, %v487
    %vm495 = vcmp.eq.s32.totalorder %v473, 3
    %v496 = vsel %vm495, %v417, %v494
    %vm497 = vcmp.eq.s32.totalorder %v473, 4
    %499 = vset.pattern.permute.xlu0 9
    %500 = vperm.xlu0 %499, %v452
    %v501 = vpop.permute.xlu0 %500
    %v503 = vsel %vm497, %v501, %v496
    %v504 = vrot.slane %v503, 4
    %v505 = vadd.f32 %v503, %v504
    %v506 = vrot.slane %v505, 2
    %v507 = vadd.f32 %v505, %v506
    %v508 = vrot.slane %v507, 1
    %v509 = vadd.f32 %v507, %v508
    %v510 = vmul.f32 %v509, 0.125
    %512 = vset.pattern.permute.xlu0 10
    %513 = vperm.xlu0 %512, %v471
    %v514 = vpop.permute.xlu0 %513
    %v516 = vsel %vm474, %v514, 1e+30
    %v517 = vsel %vm481, %v478, %v516
    %v518 = vrot.slane %v517, 4
    %v519 = vmin.f32 %v517, %v518
    %v520 = vrot.slane %v519, 2
    %v521 = vmin.f32 %v519, %v520
    %v522 = vrot.slane %v521, 1
    %v523 = vmin.f32 %v521, %v522
    %v524 = vlaneseq
    %v525 = vshrl.u32 %v524, 7
    %v526 = vcvt.s32.f32 %v525
    %vm527 = vcmp.eq.f32.partialorder %v517, %v523
    %v528 = vsel %vm527, %v526, 1e+30
    %v529 = vrot.slane %v528, 4
    %v530 = vmin.f32 %v528, %v529
    %v531 = vrot.slane %v530, 2
    %v532 = vmin.f32 %v530, %v531
    %v533 = vrot.slane %v532, 1
    %v534 = vmin.f32 %v532, %v533
    %vm535 = vcmp.lt.f32.partialorder %v523, 5e+29
    %537 = vrot.lane.b32.xlu0 %v523, 127
    %v538 = vpop.permute.xlu0 %537
    %v540 = vsel %vm535, %v523, %v538
    %542 = vrot.lane.b32.xlu0 %v534, 127
    %v543 = vpop.permute.xlu0 %542
    %v545 = vsel %vm535, %v534, %v543
    %vm546 = vcmp.eq.s32.totalorder %v473, 5
    %s548 = vtos %v540
    %v549 = vstv %s548
    %v551 = vsel %vm546, %v549, %v510
    %vm552 = vcmp.eq.s32.totalorder %v473, 6
    %s554 = vtos %v545
    %v555 = vstv %s554
    %v557 = vsel %vm552, %v555, %v551
    %558 = vst [vmem:[%s2] sm:$0xff] %v557
    // Predicated region
    $region18: #{panda_refine_forward.1} parent=1 // pred_check
      _
    $region19: #{panda_refine_forward.1} parent=1 // pred_check_branch
      %560 = sbr.rel (0) target = $region21
    $region20: #{panda_refine_forward.1} parent=1 // pred_region
      _
    $region21: #{panda_refine_forward.1} parent=1 // pred_fallthru
      _
    // Predicated region
    $region22: #{panda_refine_forward.1} parent=1 // pred_check
      _
    $region23: #{panda_refine_forward.1} parent=1 // pred_check_branch
      %562 = sbr.rel (0) target = $region25
    $region24: #{panda_refine_forward.1} parent=1 // pred_region
      _
    $region25: #{panda_refine_forward.1} parent=1 // pred_fallthru
      _
    %563 = vsyncpa [#allocation3], 1
    %564 = vsyncpa [#allocation5], 1

</llo_original>
